<compile_context>
chip_gen: v6e
topology: v6e:2x2x1
jax: 0.10.0
libtpu: 0.0.40
codegen_flags: <defaults>
</compile_context>

<pallas_src>
import jax
import jax.numpy as jnp
from jax.experimental import pallas as pl
from jax.experimental.pallas import tpu as pltpu

LN_EPS = 1e-5  # torch.nn.LayerNorm default


def _round_up(v, m):
    return (v + m - 1) // m * m


def _make_kernel(input_size, hidden_sizes, tb, total_rows):
    """Kernel closed over the static topology and tile geometry.

    ref layout: (x, w_dense_0, ..., w_dense_{n-1}, param_pack, o)
      w_dense_i : bf16 (in_i, out_i), pre-transposed for x @ W
      param_pack: f32 (n_dense + 2, pack_width)
                  rows 0..n_dense-1 : per-layer biases
                  row  n_dense      : output-head weight row (h_last values)
                  row  n_dense + 1  : output-head bias (1 value)
      o         : f32 (1, 1, tb) lane-major block of sigmoids
    """
    dims = [input_size] + list(hidden_sizes)
    n_dense = len(hidden_sizes)
    residual_flags = tuple(
        hidden_sizes[i] == hidden_sizes[i + 1] for i in range(len(hidden_sizes) - 1)
    )
    ragged = (total_rows % tb) != 0   # last block extends past the array

    def kernel(x_ref, *rest):
        o_ref = rest[-1]
        pack_ref = rest[-2]
        w_refs = rest[:-2]

        xv = x_ref[...]
        if ragged:
            # Zero the out-of-bounds rows of the ragged last block (garbage VMEM).
            # All math is row-independent, but this keeps NaN/Inf out entirely.
            gi = pl.program_id(0)
            rows = jax.lax.broadcasted_iota(jnp.int32, (tb, 1), 0) + gi * tb
            xv = jnp.where(rows < total_rows, xv, jnp.zeros_like(xv))

        def dense_relu_ln(h, idx):
            out_dim = dims[idx + 1]
            # bf16 MXU matmul, f32 accumulation.
            y = jnp.dot(h.astype(jnp.bfloat16), w_refs[idx][...],
                        preferred_element_type=jnp.float32)
            bias = pack_ref[idx:idx + 1, :][:, :out_dim]          # (1, out) f32
            y = jnp.maximum(y + bias, 0.0)                        # ReLU
            # Two-pass LayerNorm (gamma=1, beta=0): robust post-ReLU variance.
            mean = jnp.mean(y, axis=-1, keepdims=True)
            c = y - mean
            var = jnp.mean(c * c, axis=-1, keepdims=True)
            return c * jax.lax.rsqrt(var + LN_EPS)

        # input_proj
        h = dense_relu_ln(xv, 0)

        # hidden layers with optional residual (static topology, trace-time)
        for layer in range(n_dense - 1):
            r = h
            h = dense_relu_ln(h, layer + 1)
            if residual_flags[layer]:
                h = h + r

        # Output head as (1, last) x (tb, last)^T on the MXU -> lane-major (1, tb).
        last = dims[-1]
        w_row = pack_ref[n_dense:n_dense + 1, :][:, :last].astype(jnp.bfloat16)
        b_out = pack_ref[n_dense + 1:n_dense + 2, :][:, :1]        # (1, 1) f32
        logits = jax.lax.dot_general(
            w_row, h.astype(jnp.bfloat16),
            dimension_numbers=(((1,), (1,)), ((), ())),
            preferred_element_type=jnp.float32) + b_out            # (1, tb)
        o_ref[...] = jax.nn.sigmoid(logits)[None]                  # (1, 1, tb)

    return kernel


def init_params(key, input_size, hidden_sizes):
    """Kaiming-normal (fan_in, relu) weights, zero biases — matches _init_weights.

    Weights are stored pre-transposed as (in, out).
    """
    dims = [input_size] + list(hidden_sizes) + [1]
    ws, bs = [], []
    for i in range(len(dims) - 1):
        fan_in, fan_out = dims[i], dims[i + 1]
        key, sub = jax.random.split(key)
        std = (2.0 / fan_in) ** 0.5
        ws.append(std * jax.random.normal(sub, (fan_in, fan_out), dtype=jnp.float32))
        bs.append(jnp.zeros((fan_out,), dtype=jnp.float32))
    return ws, bs


def pack_params(ws, bs, hidden_sizes):
    """Split params into bf16 dense weights + one packed f32 small-param buffer."""
    n_dense = len(hidden_sizes)
    pack_width = _round_up(max(hidden_sizes), 128)
    pack = jnp.zeros((n_dense + 2, pack_width), dtype=jnp.float32)
    for i in range(n_dense):
        pack = pack.at[i, :bs[i].shape[0]].set(bs[i])
    w_out_row = ws[-1][:, 0]                                   # (h_last,)
    pack = pack.at[n_dense, :w_out_row.shape[0]].set(w_out_row)
    pack = pack.at[n_dense + 1, 0].set(bs[-1][0])
    weights_bf16 = [w.astype(jnp.bfloat16) for w in ws[:-1]]   # hidden weights only
    return weights_bf16, pack


def _vmem_limit_bytes(tb, input_size, hidden_sizes, pack_shape, x_itemsize):
    """Honest VMEM budget (double-buffered tiles + resident params + activations)."""
    def tile_bytes(r, c, itemsize):
        return _round_up(max(r, 1), 8) * _round_up(max(c, 1), 128) * itemsize

    dims = [input_size] + list(hidden_sizes)
    total = 2 * tile_bytes(tb, input_size, x_itemsize)         # x (double-buffered)
    total += 2 * tile_bytes(8, tb, 4)                          # lane-dense output blocks
    for i in range(len(dims) - 1):
        total += 2 * tile_bytes(dims[i], dims[i + 1], 2)       # bf16 weights
    total += 2 * tile_bytes(pack_shape[0], pack_shape[1], 4)   # param pack
    total += 10 * tile_bytes(tb, max(dims), 4)                 # live activations / temps
    total += 8 * 1024 * 1024                                   # compiler scratch headroom
    # No artificial floor; stay below v7x's 64 MiB physical VMEM.
    return min(total, 56 * 1024 * 1024)


def recommender_forward(x, weights_bf16, pack, input_size, hidden_sizes, tb_max=2048):
    """Batch-gridded Pallas forward pass.

    x: (batch, input_size) f32 or bf16 (bf16 halves the streamed HBM traffic)
    returns (batch, 1) f32.
    """
    batch = x.shape[0]
    align = 16 if x.dtype == jnp.bfloat16 else 8     # sublane alignment per dtype
    total_rows = _round_up(batch, align)
    if total_rows != batch:                          # at most align-1 padded rows
        x = jnp.pad(x, ((0, total_rows - batch), (0, 0)))

    # Big tiles amortise the ~0.35us/step grid overhead; keep >=2 steps whenever
    # possible so the "parallel" axis can feed both v7x TensorCores.
    tb = min(tb_max, max(align, _round_up(pl.cdiv(total_rows, 2), align)))
    tb = min(tb, total_rows)
    num_tiles = pl.cdiv(total_rows, tb)

    kernel = _make_kernel(input_size, hidden_sizes, tb, total_rows)

    in_specs = [pl.BlockSpec((tb, input_size), lambda i: (i, 0))]   # streamed x tiles
    for w in weights_bf16:                                          # resident weights
        in_specs.append(pl.BlockSpec(tuple(w.shape), lambda i: (0, 0)))
    in_specs.append(pl.BlockSpec(tuple(pack.shape), lambda i: (0, 0)))  # resident pack

    out = pl.pallas_call(
        kernel,
        out_shape=jax.ShapeDtypeStruct((num_tiles, 1, tb), jnp.float32),
        grid=(num_tiles,),
        in_specs=in_specs,
        out_specs=pl.BlockSpec((1, 1, tb), lambda i: (i, 0, 0)),    # lane-dense output
        compiler_params=pltpu.CompilerParams(
            dimension_semantics=("parallel",),
            vmem_limit_bytes=_vmem_limit_bytes(
                tb, input_size, hidden_sizes, pack.shape, x.dtype.itemsize),
        ),
    )(x, *weights_bf16, pack)
    return out.reshape(num_tiles * tb)[:batch].reshape(batch, 1)


def _reference_forward(x, weights_bf16, ws, bs, hidden_sizes):
    """Plain-JAX reference mirroring the kernel math (incl. bf16 matmul operands)."""
    h = x
    n_dense = len(hidden_sizes)
    for i in range(n_dense):
        y = jnp.dot(h.astype(jnp.bfloat16), weights_bf16[i],
                    preferred_element_type=jnp.float32) + bs[i][None, :]
        y = jnp.maximum(y, 0.0)
        mean = jnp.mean(y, axis=-1, keepdims=True)
        c = y - mean
        var = jnp.mean(c * c, axis=-1, keepdims=True)
        hn = c * jax.lax.rsqrt(var + LN_EPS)
        if i >= 1 and hidden_sizes[i - 1] == hidden_sizes[i]:
            hn = hn + h
        h = hn
    logits = jnp.dot(h.astype(jnp.bfloat16), ws[-1].astype(jnp.bfloat16),
                     preferred_element_type=jnp.float32) + bs[-1][None, :]
    return jax.nn.sigmoid(logits)


if __name__ == "__main__":
    key = jax.random.PRNGKey(0)

    input_size = 16
    hidden_sizes = [32, 32, 64]   # one residual connection (32->32), one without (32->64)

    key, pkey = jax.random.split(key)
    ws, bs = init_params(pkey, input_size, hidden_sizes)
    # Perturb biases away from the zero init so the packed-bias path is exercised.
    new_bs = []
    for b in bs:
        key, bkey = jax.random.split(key)
        new_bs.append(0.05 * jax.random.normal(bkey, b.shape, dtype=jnp.float32))
    bs = new_bs

    weights_bf16, pack = pack_params(ws, bs, hidden_sizes)

    ok = True
    # (tiny single-tile f32, ragged multi-tile bf16 input, exactly-split multi-tile f32)
    cases = [(2, jnp.float32), (200, jnp.bfloat16), (272, jnp.float32)]
    for batch, dt in cases:
        key, xkey = jax.random.split(key)
        x = jax.random.normal(xkey, (batch, input_size), dtype=dt)

        out = recommender_forward(x, weights_bf16, pack, input_size, hidden_sizes)
        out = jax.block_until_ready(out)

        ref = _reference_forward(x, weights_bf16, ws, bs, hidden_sizes)
        assert out.shape == (batch, 1)
        ok = ok and bool(jnp.allclose(out, ref, atol=2e-4, rtol=2e-4))

    assert ok
    print("KERNEL_OK")
</pallas_src>

<mosaic_0001>
module attributes {stable_mosaic.version = 11 : i64} {
  func.func @kernel(%arg0: i32, %arg1: memref<8x16xf32, #tpu.memory_space<vmem>>, %arg2: memref<16x32xbf16, #tpu.memory_space<vmem>>, %arg3: memref<32x32xbf16, #tpu.memory_space<vmem>>, %arg4: memref<32x64xbf16, #tpu.memory_space<vmem>>, %arg5: memref<5x128xf32, #tpu.memory_space<vmem>>, %arg6: memref<1x1x8xf32, #tpu.memory_space<vmem>>) attributes {dimension_semantics = [#tpu.dimension_semantics<parallel>], iteration_bounds = array<i64: 1>, scalar_prefetch = 0 : i64, scratch_operands = 0 : i64, tpu.core_type = #tpu.core_type<tc>, window_params = [{transform_indices = @transform_0, window_bounds = array<i64: 8, 16>}, {pipeline_mode = #tpu.pipeline_mode<synchronous>, transform_indices = @transform_1, window_bounds = array<i64: 16, 32>}, {pipeline_mode = #tpu.pipeline_mode<synchronous>, transform_indices = @transform_2, window_bounds = array<i64: 32, 32>}, {pipeline_mode = #tpu.pipeline_mode<synchronous>, transform_indices = @transform_3, window_bounds = array<i64: 32, 64>}, {pipeline_mode = #tpu.pipeline_mode<synchronous>, transform_indices = @transform_4, window_bounds = array<i64: 5, 128>}, {transform_indices = @transform_5, window_bounds = array<i64: 1, 1, 8>}]} {
    %c0 = arith.constant 0 : index
    %c0_0 = arith.constant 0 : index
    %0 = vector.load %arg1[%c0, %c0_0] : memref<8x16xf32, #tpu.memory_space<vmem>>, vector<8x16xf32>
    %1 = arith.truncf %0 : vector<8x16xf32> to vector<8x16xbf16>
    %c0_1 = arith.constant 0 : index
    %c0_2 = arith.constant 0 : index
    %2 = vector.load %arg2[%c0_1, %c0_2] : memref<16x32xbf16, #tpu.memory_space<vmem>>, vector<16x32xbf16>
    %cst = arith.constant dense<0.000000e+00> : vector<8x32xf32>
    %3 = tpu.matmul %1, %2, %cst {dimension_numbers = #tpu.dot_dimension_numbers<[1], [0], [0], [1], [0, 0, 1, 1], [], []>} : vector<8x16xbf16>, vector<16x32xbf16>, vector<8x32xf32> -> vector<8x32xf32>
    %c0_3 = arith.constant 0 : index
    %c0_4 = arith.constant 0 : index
    %4 = vector.load %arg5[%c0_3, %c0_4] : memref<5x128xf32, #tpu.memory_space<vmem>>, vector<1x128xf32>
    %5 = vector.extract_strided_slice %4 {offsets = [0, 0], sizes = [1, 32], strides = [1, 1]} : vector<1x128xf32> to vector<1x32xf32>
    %6 = vector.broadcast %5 : vector<1x32xf32> to vector<8x32xf32>
    %7 = arith.addf %3, %6 : vector<8x32xf32>
    %cst_5 = arith.constant 0.000000e+00 : f32
    %8 = vector.broadcast %cst_5 : f32 to vector<8x32xf32>
    %9 = arith.maximumf %7, %8 : vector<8x32xf32>
    %cst_6 = arith.constant dense<0.000000e+00> : vector<8xf32>
    %10 = vector.multi_reduction <add>, %9, %cst_6 [1] : vector<8x32xf32> to vector<8xf32>
    %11 = vector.shape_cast %10 : vector<8xf32> to vector<8x1xf32>
    %cst_7 = arith.constant 3.200000e+01 : f32
    %12 = vector.broadcast %cst_7 : f32 to vector<8x1xf32>
    %13 = arith.divf %11, %12 : vector<8x1xf32>
    %14 = vector.broadcast %13 : vector<8x1xf32> to vector<8x32xf32>
    %15 = arith.subf %9, %14 : vector<8x32xf32>
    %16 = arith.mulf %15, %15 : vector<8x32xf32>
    %cst_8 = arith.constant dense<0.000000e+00> : vector<8xf32>
    %17 = vector.multi_reduction <add>, %16, %cst_8 [1] : vector<8x32xf32> to vector<8xf32>
    %18 = vector.shape_cast %17 : vector<8xf32> to vector<8x1xf32>
    %cst_9 = arith.constant 3.200000e+01 : f32
    %19 = vector.broadcast %cst_9 : f32 to vector<8x1xf32>
    %20 = arith.divf %18, %19 : vector<8x1xf32>
    %cst_10 = arith.constant 9.99999974E-6 : f32
    %21 = vector.broadcast %cst_10 : f32 to vector<8x1xf32>
    %22 = arith.addf %20, %21 : vector<8x1xf32>
    %23 = math.rsqrt %22 : vector<8x1xf32>
    %24 = vector.broadcast %23 : vector<8x1xf32> to vector<8x32xf32>
    %25 = arith.mulf %15, %24 : vector<8x32xf32>
    %26 = arith.truncf %25 : vector<8x32xf32> to vector<8x32xbf16>
    %c0_11 = arith.constant 0 : index
    %c0_12 = arith.constant 0 : index
    %27 = vector.load %arg3[%c0_11, %c0_12] : memref<32x32xbf16, #tpu.memory_space<vmem>>, vector<32x32xbf16>
    %cst_13 = arith.constant dense<0.000000e+00> : vector<8x32xf32>
    %28 = tpu.matmul %26, %27, %cst_13 {dimension_numbers = #tpu.dot_dimension_numbers<[1], [0], [0], [1], [0, 0, 1, 1], [], []>} : vector<8x32xbf16>, vector<32x32xbf16>, vector<8x32xf32> -> vector<8x32xf32>
    %c1 = arith.constant 1 : index
    %c0_14 = arith.constant 0 : index
    %29 = vector.load %arg5[%c1, %c0_14] : memref<5x128xf32, #tpu.memory_space<vmem>>, vector<1x128xf32>
    %30 = vector.extract_strided_slice %29 {offsets = [0, 0], sizes = [1, 32], strides = [1, 1]} : vector<1x128xf32> to vector<1x32xf32>
    %31 = vector.broadcast %30 : vector<1x32xf32> to vector<8x32xf32>
    %32 = arith.addf %28, %31 : vector<8x32xf32>
    %cst_15 = arith.constant 0.000000e+00 : f32
    %33 = vector.broadcast %cst_15 : f32 to vector<8x32xf32>
    %34 = arith.maximumf %32, %33 : vector<8x32xf32>
    %cst_16 = arith.constant dense<0.000000e+00> : vector<8xf32>
    %35 = vector.multi_reduction <add>, %34, %cst_16 [1] : vector<8x32xf32> to vector<8xf32>
    %36 = vector.shape_cast %35 : vector<8xf32> to vector<8x1xf32>
    %cst_17 = arith.constant 3.200000e+01 : f32
    %37 = vector.broadcast %cst_17 : f32 to vector<8x1xf32>
    %38 = arith.divf %36, %37 : vector<8x1xf32>
    %39 = vector.broadcast %38 : vector<8x1xf32> to vector<8x32xf32>
    %40 = arith.subf %34, %39 : vector<8x32xf32>
    %41 = arith.mulf %40, %40 : vector<8x32xf32>
    %cst_18 = arith.constant dense<0.000000e+00> : vector<8xf32>
    %42 = vector.multi_reduction <add>, %41, %cst_18 [1] : vector<8x32xf32> to vector<8xf32>
    %43 = vector.shape_cast %42 : vector<8xf32> to vector<8x1xf32>
    %cst_19 = arith.constant 3.200000e+01 : f32
    %44 = vector.broadcast %cst_19 : f32 to vector<8x1xf32>
    %45 = arith.divf %43, %44 : vector<8x1xf32>
    %cst_20 = arith.constant 9.99999974E-6 : f32
    %46 = vector.broadcast %cst_20 : f32 to vector<8x1xf32>
    %47 = arith.addf %45, %46 : vector<8x1xf32>
    %48 = math.rsqrt %47 : vector<8x1xf32>
    %49 = vector.broadcast %48 : vector<8x1xf32> to vector<8x32xf32>
    %50 = arith.mulf %40, %49 : vector<8x32xf32>
    %51 = arith.addf %50, %25 : vector<8x32xf32>
    %52 = arith.truncf %51 : vector<8x32xf32> to vector<8x32xbf16>
    %c0_21 = arith.constant 0 : index
    %c0_22 = arith.constant 0 : index
    %53 = vector.load %arg4[%c0_21, %c0_22] : memref<32x64xbf16, #tpu.memory_space<vmem>>, vector<32x64xbf16>
    %cst_23 = arith.constant dense<0.000000e+00> : vector<8x64xf32>
    %54 = tpu.matmul %52, %53, %cst_23 {dimension_numbers = #tpu.dot_dimension_numbers<[1], [0], [0], [1], [0, 0, 1, 1], [], []>} : vector<8x32xbf16>, vector<32x64xbf16>, vector<8x64xf32> -> vector<8x64xf32>
    %c2 = arith.constant 2 : index
    %c0_24 = arith.constant 0 : index
    %55 = vector.load %arg5[%c2, %c0_24] : memref<5x128xf32, #tpu.memory_space<vmem>>, vector<1x128xf32>
    %56 = vector.extract_strided_slice %55 {offsets = [0, 0], sizes = [1, 64], strides = [1, 1]} : vector<1x128xf32> to vector<1x64xf32>
    %57 = vector.broadcast %56 : vector<1x64xf32> to vector<8x64xf32>
    %58 = arith.addf %54, %57 : vector<8x64xf32>
    %cst_25 = arith.constant 0.000000e+00 : f32
    %59 = vector.broadcast %cst_25 : f32 to vector<8x64xf32>
    %60 = arith.maximumf %58, %59 : vector<8x64xf32>
    %cst_26 = arith.constant dense<0.000000e+00> : vector<8xf32>
    %61 = vector.multi_reduction <add>, %60, %cst_26 [1] : vector<8x64xf32> to vector<8xf32>
    %62 = vector.shape_cast %61 : vector<8xf32> to vector<8x1xf32>
    %cst_27 = arith.constant 6.400000e+01 : f32
    %63 = vector.broadcast %cst_27 : f32 to vector<8x1xf32>
    %64 = arith.divf %62, %63 : vector<8x1xf32>
    %65 = vector.broadcast %64 : vector<8x1xf32> to vector<8x64xf32>
    %66 = arith.subf %60, %65 : vector<8x64xf32>
    %67 = arith.mulf %66, %66 : vector<8x64xf32>
    %cst_28 = arith.constant dense<0.000000e+00> : vector<8xf32>
    %68 = vector.multi_reduction <add>, %67, %cst_28 [1] : vector<8x64xf32> to vector<8xf32>
    %69 = vector.shape_cast %68 : vector<8xf32> to vector<8x1xf32>
    %cst_29 = arith.constant 6.400000e+01 : f32
    %70 = vector.broadcast %cst_29 : f32 to vector<8x1xf32>
    %71 = arith.divf %69, %70 : vector<8x1xf32>
    %cst_30 = arith.constant 9.99999974E-6 : f32
    %72 = vector.broadcast %cst_30 : f32 to vector<8x1xf32>
    %73 = arith.addf %71, %72 : vector<8x1xf32>
    %74 = math.rsqrt %73 : vector<8x1xf32>
    %75 = vector.broadcast %74 : vector<8x1xf32> to vector<8x64xf32>
    %76 = arith.mulf %66, %75 : vector<8x64xf32>
    %c3 = arith.constant 3 : index
    %c0_31 = arith.constant 0 : index
    %77 = vector.load %arg5[%c3, %c0_31] : memref<5x128xf32, #tpu.memory_space<vmem>>, vector<1x128xf32>
    %78 = vector.extract_strided_slice %77 {offsets = [0, 0], sizes = [1, 64], strides = [1, 1]} : vector<1x128xf32> to vector<1x64xf32>
    %79 = arith.truncf %78 : vector<1x64xf32> to vector<1x64xbf16>
    %c4 = arith.constant 4 : index
    %c0_32 = arith.constant 0 : index
    %80 = vector.load %arg5[%c4, %c0_32] : memref<5x128xf32, #tpu.memory_space<vmem>>, vector<1x128xf32>
    %81 = vector.extract_strided_slice %80 {offsets = [0, 0], sizes = [1, 1], strides = [1, 1]} : vector<1x128xf32> to vector<1x1xf32>
    %82 = arith.truncf %76 : vector<8x64xf32> to vector<8x64xbf16>
    %cst_33 = arith.constant dense<0.000000e+00> : vector<1x8xf32>
    %83 = tpu.matmul %79, %82, %cst_33 {dimension_numbers = #tpu.dot_dimension_numbers<[1], [1], [0], [0], [0, 0, 1, 0], [], []>} : vector<1x64xbf16>, vector<8x64xbf16>, vector<1x8xf32> -> vector<1x8xf32>
    %84 = vector.broadcast %81 : vector<1x1xf32> to vector<1x8xf32>
    %85 = arith.addf %83, %84 : vector<1x8xf32>
    %86 = arith.negf %85 : vector<1x8xf32>
    %87 = math.exp %86 : vector<1x8xf32>
    %cst_34 = arith.constant 1.000000e+00 : f32
    %88 = vector.broadcast %cst_34 : f32 to vector<1x8xf32>
    %89 = arith.addf %88, %87 : vector<1x8xf32>
    %90 = arith.divf %88, %89 : vector<1x8xf32>
    %91 = vector.shape_cast %90 : vector<1x8xf32> to vector<1x1x8xf32>
    %c0_35 = arith.constant 0 : index
    %c0_36 = arith.constant 0 : index
    %c0_37 = arith.constant 0 : index
    %92 = vector.load %arg6[%c0_35, %c0_36, %c0_37] : memref<1x1x8xf32, #tpu.memory_space<vmem>>, vector<1x1x8xf32>
    tpu.vector_store %arg6[%c0_35, %c0_36, %c0_37], %91 {strides = array<i32>} : memref<1x1x8xf32, #tpu.memory_space<vmem>>, vector<1x1x8xf32>,
    return
  }
  func.func @transform_0(%arg0: i32) -> (i32, i32) {
    %c0_i32 = arith.constant 0 : i32
    %c0_i32_0 = arith.constant 0 : i32
    return %arg0, %c0_i32 : i32, i32
  }
  func.func @transform_1(%arg0: i32) -> (i32, i32) {
    %c0_i32 = arith.constant 0 : i32
    %c0_i32_0 = arith.constant 0 : i32
    %c0_i32_1 = arith.constant 0 : i32
    return %c0_i32, %c0_i32_0 : i32, i32
  }
  func.func @transform_2(%arg0: i32) -> (i32, i32) {
    %c0_i32 = arith.constant 0 : i32
    %c0_i32_0 = arith.constant 0 : i32
    %c0_i32_1 = arith.constant 0 : i32
    return %c0_i32, %c0_i32_0 : i32, i32
  }
  func.func @transform_3(%arg0: i32) -> (i32, i32) {
    %c0_i32 = arith.constant 0 : i32
    %c0_i32_0 = arith.constant 0 : i32
    %c0_i32_1 = arith.constant 0 : i32
    return %c0_i32, %c0_i32_0 : i32, i32
  }
  func.func @transform_4(%arg0: i32) -> (i32, i32) {
    %c0_i32 = arith.constant 0 : i32
    %c0_i32_0 = arith.constant 0 : i32
    %c0_i32_1 = arith.constant 0 : i32
    return %c0_i32, %c0_i32_0 : i32, i32
  }
  func.func @transform_5(%arg0: i32) -> (i32, i32, i32) {
    %c0_i32 = arith.constant 0 : i32
    %c0_i32_0 = arith.constant 0 : i32
    %c0_i32_1 = arith.constant 0 : i32
    return %arg0, %c0_i32, %c0_i32_0 : i32, i32, i32
  }
}

</mosaic_0001>

<llo_original>
// kernel: tpu_custom_call.1
$region0: #{tpu_custom_call.1}
  #allocation0 [shape = 'u32[]', space=smem, size = 0x4, offset = 0x4, fixed_abs, tag = 'smem constant byte address 0x4 - core index']
  #allocation1 [shape = 'u32[144,128]{1,0:T(1,128)}', space=vmem, size = 0x12000, scoped, tag = 'internal scratch']
  %s0 = inlined_call_operand.hbm [shape: f32[8,16], index: 0, kind: input, shape index: {}]
  %s1 = inlined_call_operand.hbm [shape: bf16[16,32], index: 1, kind: input, shape index: {}]
  %s2 = inlined_call_operand.hbm [shape: bf16[32,32], index: 2, kind: input, shape index: {}]
  %s3 = inlined_call_operand.hbm [shape: bf16[32,64], index: 3, kind: input, shape index: {}]
  %s4 = inlined_call_operand.hbm [shape: f32[5,128], index: 4, kind: input, shape index: {}]
  %s5 = inlined_call_operand.hbm [shape: f32[1,1,8], index: 5, kind: output, shape index: {}]
  %s6 = sld [smem:[#allocation0]]
  $region50: #{tpu_custom_call.1} parent=0
    _
  %s8 = ssub.s32 1, %s6
  %s9 = scalar_select 0, %s8, %s6
  $region1: #{tpu_custom_call.1} parent=0
    #allocation2 [shape = 'u8[4096]{0}', space=vmem, size = 0x1000, scoped, tag = 'input window, operand 0, single buffered']
    #allocation3 [shape = 's32[1]{0}', space=sflag, size = 0x4, scoped, tag = 'scoped memory for tpu_custom_call.1']
    #allocation4 [shape = 's32[1]{0}', space=sflag, size = 0x4, scoped, tag = 'scoped memory for tpu_custom_call.1']
    #allocation5 [shape = 'u8[4096]{0}', space=vmem, size = 0x1000, scoped, tag = 'input window, operand 1, single buffered']
    #allocation6 [shape = 's32[1]{0}', space=sflag, size = 0x4, scoped, tag = 'scoped memory for tpu_custom_call.1']
    #allocation7 [shape = 'u8[8192]{0}', space=vmem, size = 0x2000, scoped, tag = 'input window, operand 2, single buffered']
    #allocation8 [shape = 'u8[8192]{0}', space=vmem, size = 0x2000, scoped, tag = 'input window, operand 3, single buffered']
    #allocation9 [shape = 's32[1]{0}', space=sflag, size = 0x4, scoped, tag = 'scoped memory for tpu_custom_call.1']
    #allocation10 [shape = 'u8[4096]{0}', space=vmem, size = 0x1000, scoped, tag = 'input window, operand 4, single buffered']
    #allocation11 [shape = 'u8[512]{0}', space=vmem, size = 0x400, scoped, tag = 'output window, operand 0, single buffered']
    %10 = vsyncpa [#allocation3], 0
    %11 = vsyncpa [#allocation6], 0
    %12 = vsyncpa [#allocation9], 0
    %13 = vsyncpa [#allocation4], 0
    // Predicated region
    $region2: #{tpu_custom_call.1} parent=1 // pred_check
      _
    $region3: #{tpu_custom_call.1} parent=1 // pred_check_branch
      %15 = sbr.rel (0) target = $region5
    $region4: #{tpu_custom_call.1} parent=1 // pred_region
      %s17 = ssub.s32 128, 128
      %18 = vsyncadd [#allocation3], %s17
      %s20 = sshll.u32 [#allocation2], 4
      %s21 = int_to_ptr.vmem [resolvable:$true] %s20
      %23 = dma.hbm_to_vmem [thread:$0]  %s0, 128, %s21, [#allocation3]
    $region5: #{tpu_custom_call.1} parent=1 // pred_fallthru
      _
    // Predicated region
    $region6: #{tpu_custom_call.1} parent=1 // pred_check
      _
    $region7: #{tpu_custom_call.1} parent=1 // pred_check_branch
      %25 = sbr.rel (0) target = $region9
    $region8: #{tpu_custom_call.1} parent=1 // pred_region
      %s27 = ssub.s32 128, 128
      %28 = vsyncadd [#allocation6], %s27
      %s29 = sshll.u32 [#allocation5], 4
      %s30 = int_to_ptr.vmem [resolvable:$true] %s29
      %35 = dma.hbm_to_vmem [thread:$0]  %s1, 128, %s30, [#allocation6], 64, 64, 4
    $region9: #{tpu_custom_call.1} parent=1 // pred_fallthru
      _
    // Predicated region
    $region10: #{tpu_custom_call.1} parent=1 // pred_check
      _
    $region11: #{tpu_custom_call.1} parent=1 // pred_check_branch
      %37 = sbr.rel (0) target = $region13
    $region12: #{tpu_custom_call.1} parent=1 // pred_region
      %s39 = ssub.s32 256, 256
      %40 = vsyncadd [#allocation6], %s39
      %s41 = sshll.u32 [#allocation7], 4
      %s42 = int_to_ptr.vmem [resolvable:$true] %s41
      %47 = dma.hbm_to_vmem [thread:$0]  %s2, 256, %s42, [#allocation6], 64, 64, 4
    $region13: #{tpu_custom_call.1} parent=1 // pred_fallthru
      _
    // Predicated region
    $region14: #{tpu_custom_call.1} parent=1 // pred_check
      _
    $region15: #{tpu_custom_call.1} parent=1 // pred_check_branch
      %49 = sbr.rel (0) target = $region17
    $region16: #{tpu_custom_call.1} parent=1 // pred_region
      %s51 = ssub.s32 256, 256
      %52 = vsyncadd [#allocation9], %s51
      %s53 = sshll.u32 [#allocation8], 4
      %s54 = int_to_ptr.vmem [resolvable:$true] %s53
      %59 = dma.hbm_to_vmem [thread:$0]  %s3, 256, %s54, [#allocation9], 64, 64, 4
    $region17: #{tpu_custom_call.1} parent=1 // pred_fallthru
      _
    // Predicated region
    $region18: #{tpu_custom_call.1} parent=1 // pred_check
      _
    $region19: #{tpu_custom_call.1} parent=1 // pred_check_branch
      %61 = sbr.rel (0) target = $region21
    $region20: #{tpu_custom_call.1} parent=1 // pred_region
      %s63 = ssub.s32 128, 128
      %64 = vsyncadd [#allocation9], %s63
      %s66 = sshll.u32 [#allocation10], 4
      %s67 = int_to_ptr.vmem [resolvable:$true] %s66
      %69 = dma.hbm_to_vmem [thread:$0]  %s4, 128, %s67, [#allocation9]
    $region21: #{tpu_custom_call.1} parent=1 // pred_fallthru
      _
    // Predicated region
    $region22: #{tpu_custom_call.1} parent=1 // pred_check
      _
    $region23: #{tpu_custom_call.1} parent=1 // pred_check_branch
      %71 = sbr.rel (0) target = $region25
    $region24: #{tpu_custom_call.1} parent=1 // pred_region
      %72 = dma.done [#allocation3], 128
    $region25: #{tpu_custom_call.1} parent=1 // pred_fallthru
      _
    // Predicated region
    $region26: #{tpu_custom_call.1} parent=1 // pred_check
      _
    $region27: #{tpu_custom_call.1} parent=1 // pred_check_branch
      %74 = sbr.rel (0) target = $region29
    $region28: #{tpu_custom_call.1} parent=1 // pred_region
      %75 = dma.done [#allocation6], 128
    $region29: #{tpu_custom_call.1} parent=1 // pred_fallthru
      _
    // Predicated region
    $region30: #{tpu_custom_call.1} parent=1 // pred_check
      _
    $region31: #{tpu_custom_call.1} parent=1 // pred_check_branch
      %77 = sbr.rel (0) target = $region33
    $region32: #{tpu_custom_call.1} parent=1 // pred_region
      %78 = dma.done [#allocation6], 256
    $region33: #{tpu_custom_call.1} parent=1 // pred_fallthru
      _
    // Predicated region
    $region34: #{tpu_custom_call.1} parent=1 // pred_check
      _
    $region35: #{tpu_custom_call.1} parent=1 // pred_check_branch
      %80 = sbr.rel (0) target = $region37
    $region36: #{tpu_custom_call.1} parent=1 // pred_region
      %81 = dma.done [#allocation9], 256
    $region37: #{tpu_custom_call.1} parent=1 // pred_fallthru
      _
    // Predicated region
    $region38: #{tpu_custom_call.1} parent=1 // pred_check
      _
    $region39: #{tpu_custom_call.1} parent=1 // pred_check_branch
      %83 = sbr.rel (0) target = $region41
    $region40: #{tpu_custom_call.1} parent=1 // pred_region
      %84 = dma.done [#allocation9], 128
    $region41: #{tpu_custom_call.1} parent=1 // pred_fallthru
      _
    %v86 = vld [vmem:[#allocation2] sm:$0xff]
    %v87 = vpack.c.bf16 %v86, %v86
    %v88 = vld [vmem:[#allocation5] sm:$0xf]
    %v89 = vld [vmem:[#allocation5 + $0x4] sm:$0xf]
    %v90 = vld [vmem:[#allocation10] sm:$0x1]
    %v91 = vlaneseq
    %v92 = vshrl.u32 %v91, 7
    %v93 = vsub.s32 0, %v92
    %v94 = vrot.slane %v90, %v93
    %v97 = vunpack.c.l.b16 %v88
    %v98 = vunpack.c.l.b16 %v89
    %v99 = vpack.c.b16 %v98, %v97
    %vm101 = vcmask 130048
    %v103 = vsel %vm101, %v87, 0
    %105 = vmatprep.subr.bf16.mxu0 0
    %106 = vmatpush1.bf16.msra.mxu0 0
    %107 = vmatprep.subr.bf16.mxu0 0
    %108 = vmatpush1.bf16.msra.mxu0 0
    %109 = vmatprep.subr.bf16.mxu0 0
    %110 = vmatpush1.bf16.msra.mxu0 0
    %111 = vmatprep.subr.bf16.mxu0 0
    %112 = vmatpush1.bf16.msra.mxu0 0
    %113 = vmatprep.subr.bf16.mxu0 0
    %114 = vmatpush1.bf16.msra.mxu0 0
    %115 = vmatprep.subr.bf16.mxu0 0
    %116 = vmatpush1.bf16.msra.mxu0 0
    %117 = vmatprep.subr.bf16.mxu0 0
    %118 = vmatpush1.bf16.msra.mxu0 0
    %119 = vmatprep.subr.bf16.mxu0 0
    %120 = vmatpush1.bf16.msra.mxu0 %v99
    %121 = vmatprep.subr.bf16.mxu0 0
    %122 = vmatpush2.bf16.msra.mxu0 0
    %123 = vmatprep.subr.bf16.mxu0 0
    %124 = vmatpush2.bf16.msra.mxu0 0
    %125 = vmatprep.subr.bf16.mxu0 0
    %126 = vmatpush2.bf16.msra.mxu0 0
    %127 = vmatprep.subr.bf16.mxu0 0
    %128 = vmatpush2.bf16.msra.mxu0 0
    %129 = vmatprep.subr.bf16.mxu0 0
    %130 = vmatpush2.bf16.msra.mxu0 0
    %131 = vmatprep.subr.bf16.mxu0 0
    %132 = vmatpush2.bf16.msra.mxu0 0
    %133 = vmatprep.subr.bf16.mxu0 0
    %134 = vmatpush2.bf16.msra.mxu0 0
    %135 = vmatprep.subr.bf16.mxu0 0
    %136 = vmatpush2.bf16.msra.mxu0 0
    %137 = vmatprep.mubr.bf16.mxu0 0
    %138 = vmatmul.mubr.bf16.gmra.mxu0 %v103
    %v139 = vpop.f32.mrf.mxu0
    %v140 = vadd.f32 %v94, %v139
    %v141 = vpop.f32.mrf.mxu0
    %v142 = vpop.f32.mrf.mxu0
    %v143 = vpop.f32.mrf.mxu0
    %144 = vdwg.mxu0
    %v145 = vmax.f32 %v140, 0.0
    %vm146 = vcmask 261120
    %v147 = vsel %vm146, %v145, 0.0
    %148 = vadd.xlane.f32.xlu0 %v147
    %v149 = vpop.xlane.xlu0 %148
    %v150 = vrcp.pop 32.0
    %v151 = vmul.f32 %v149, %v150
    %v152 = vsub.f32 %v145, %v151
    %v153 = vmul.f32 %v152, %v152
    %v154 = vsel %vm146, %v153, 0.0
    %155 = vadd.xlane.f32.xlu0 %v154
    %v156 = vpop.xlane.xlu0 %155
    %v157 = vmul.f32 %v156, %v150
    %v158 = vadd.f32 %v157, 1e-05
    %v159 = vrsqrt.pop %v158
    %v160 = vmul.f32 %v152, %v159
    %v161 = vpack.c.bf16 %v160, %v160
    %v162 = vld [vmem:[#allocation7] sm:$0xf]
    %v163 = vld [vmem:[#allocation7 + $0x4] sm:$0xf]
    %v164 = vld [vmem:[#allocation7 + $0x8] sm:$0xf]
    %v165 = vld [vmem:[#allocation7 + $0xc] sm:$0xf]
    %v166 = vld [vmem:[#allocation10 + $0x1] sm:$0x1]
    %v167 = vlaneseq
    %v168 = vshrl.u32 %v167, 7
    %v169 = vsub.s32 0, %v168
    %v170 = vrot.slane %v166, %v169
    %v175 = vunpack.c.l.b16 %v162
    %v176 = vunpack.c.l.b16 %v163
    %v177 = vunpack.c.l.b16 %v164
    %v178 = vunpack.c.l.b16 %v165
    %v179 = vpack.c.b16 %v176, %v175
    %v180 = vpack.c.b16 %v178, %v177
    %v184 = vsel %vm146, %v161, 0
    %186 = vmatprep.subr.bf16.mxu0 0
    %187 = vmatpush1.bf16.msra.mxu0 0
    %188 = vmatprep.subr.bf16.mxu0 0
    %189 = vmatpush1.bf16.msra.mxu0 0
    %190 = vmatprep.subr.bf16.mxu0 0
    %191 = vmatpush1.bf16.msra.mxu0 0
    %192 = vmatprep.subr.bf16.mxu0 0
    %193 = vmatpush1.bf16.msra.mxu0 0
    %194 = vmatprep.subr.bf16.mxu0 0
    %195 = vmatpush1.bf16.msra.mxu0 0
    %196 = vmatprep.subr.bf16.mxu0 0
    %197 = vmatpush1.bf16.msra.mxu0 0
    %198 = vmatprep.subr.bf16.mxu0 0
    %199 = vmatpush1.bf16.msra.mxu0 %v180
    %200 = vmatprep.subr.bf16.mxu0 0
    %201 = vmatpush1.bf16.msra.mxu0 %v179
    %202 = vmatprep.subr.bf16.mxu0 0
    %203 = vmatpush2.bf16.msra.mxu0 0
    %204 = vmatprep.subr.bf16.mxu0 0
    %205 = vmatpush2.bf16.msra.mxu0 0
    %206 = vmatprep.subr.bf16.mxu0 0
    %207 = vmatpush2.bf16.msra.mxu0 0
    %208 = vmatprep.subr.bf16.mxu0 0
    %209 = vmatpush2.bf16.msra.mxu0 0
    %210 = vmatprep.subr.bf16.mxu0 0
    %211 = vmatpush2.bf16.msra.mxu0 0
    %212 = vmatprep.subr.bf16.mxu0 0
    %213 = vmatpush2.bf16.msra.mxu0 0
    %214 = vmatprep.subr.bf16.mxu0 0
    %215 = vmatpush2.bf16.msra.mxu0 0
    %216 = vmatprep.subr.bf16.mxu0 0
    %217 = vmatpush2.bf16.msra.mxu0 0
    %218 = vmatprep.mubr.bf16.mxu0 0
    %219 = vmatmul.mubr.bf16.gmra.mxu0 %v184
    %v220 = vpop.f32.mrf.mxu0
    %v221 = vadd.f32 %v170, %v220
    %v222 = vpop.f32.mrf.mxu0
    %v223 = vpop.f32.mrf.mxu0
    %v224 = vpop.f32.mrf.mxu0
    %225 = vdwg.mxu0
    %v226 = vmax.f32 %v221, 0.0
    %v227 = vsel %vm146, %v226, 0.0
    %228 = vadd.xlane.f32.xlu0 %v227
    %v229 = vpop.xlane.xlu0 %228
    %v230 = vmul.f32 %v229, %v150
    %v231 = vsub.f32 %v226, %v230
    %v232 = vmul.f32 %v231, %v231
    %v233 = vsel %vm146, %v232, 0.0
    %234 = vadd.xlane.f32.xlu0 %v233
    %v235 = vpop.xlane.xlu0 %234
    %v236 = vmul.f32 %v235, %v150
    %v237 = vadd.f32 %v236, 1e-05
    %v238 = vrsqrt.pop %v237
    %v239 = vmul.f32 %v231, %v238
    %v240 = vadd.f32 %v239, %v160
    %v241 = vpack.c.bf16 %v240, %v240
    %v242 = vld [vmem:[#allocation8] sm:$0xf]
    %v243 = vld [vmem:[#allocation8 + $0x4] sm:$0xf]
    %v244 = vld [vmem:[#allocation8 + $0x8] sm:$0xf]
    %v245 = vld [vmem:[#allocation8 + $0xc] sm:$0xf]
    %v246 = vld [vmem:[#allocation10 + $0x2] sm:$0x1]
    %v247 = vlaneseq
    %v248 = vshrl.u32 %v247, 7
    %v249 = vsub.s32 0, %v248
    %v250 = vrot.slane %v246, %v249
    %v255 = vunpack.c.l.b16 %v242
    %v256 = vunpack.c.l.b16 %v243
    %v257 = vunpack.c.l.b16 %v244
    %v258 = vunpack.c.l.b16 %v245
    %v259 = vpack.c.b16 %v256, %v255
    %v260 = vpack.c.b16 %v258, %v257
    %v264 = vsel %vm146, %v241, 0
    %266 = vmatprep.subr.bf16.mxu0 0
    %267 = vmatpush1.bf16.msra.mxu0 0
    %268 = vmatprep.subr.bf16.mxu0 0
    %269 = vmatpush1.bf16.msra.mxu0 0
    %270 = vmatprep.subr.bf16.mxu0 0
    %271 = vmatpush1.bf16.msra.mxu0 0
    %272 = vmatprep.subr.bf16.mxu0 0
    %273 = vmatpush1.bf16.msra.mxu0 0
    %274 = vmatprep.subr.bf16.mxu0 0
    %275 = vmatpush1.bf16.msra.mxu0 0
    %276 = vmatprep.subr.bf16.mxu0 0
    %277 = vmatpush1.bf16.msra.mxu0 0
    %278 = vmatprep.subr.bf16.mxu0 0
    %279 = vmatpush1.bf16.msra.mxu0 %v260
    %280 = vmatprep.subr.bf16.mxu0 0
    %281 = vmatpush1.bf16.msra.mxu0 %v259
    %282 = vmatprep.subr.bf16.mxu0 0
    %283 = vmatpush2.bf16.msra.mxu0 0
    %284 = vmatprep.subr.bf16.mxu0 0
    %285 = vmatpush2.bf16.msra.mxu0 0
    %286 = vmatprep.subr.bf16.mxu0 0
    %287 = vmatpush2.bf16.msra.mxu0 0
    %288 = vmatprep.subr.bf16.mxu0 0
    %289 = vmatpush2.bf16.msra.mxu0 0
    %290 = vmatprep.subr.bf16.mxu0 0
    %291 = vmatpush2.bf16.msra.mxu0 0
    %292 = vmatprep.subr.bf16.mxu0 0
    %293 = vmatpush2.bf16.msra.mxu0 0
    %294 = vmatprep.subr.bf16.mxu0 0
    %295 = vmatpush2.bf16.msra.mxu0 0
    %296 = vmatprep.subr.bf16.mxu0 0
    %297 = vmatpush2.bf16.msra.mxu0 0
    %298 = vmatprep.mubr.bf16.mxu0 0
    %299 = vmatmul.mubr.bf16.gmra.mxu0 %v264
    %v300 = vpop.f32.mrf.mxu0
    %v301 = vadd.f32 %v250, %v300
    %v302 = vpop.f32.mrf.mxu0
    %v303 = vpop.f32.mrf.mxu0
    %v304 = vpop.f32.mrf.mxu0
    %305 = vdwg.mxu0
    %v306 = vmax.f32 %v301, 0.0
    %vm307 = vcmask 523264
    %v308 = vsel %vm307, %v306, 0.0
    %309 = vadd.xlane.f32.xlu0 %v308
    %v310 = vpop.xlane.xlu0 %309
    %v311 = vrcp.pop 64.0
    %v312 = vmul.f32 %v310, %v311
    %v313 = vsub.f32 %v306, %v312
    %v314 = vmul.f32 %v313, %v313
    %v315 = vsel %vm307, %v314, 0.0
    %316 = vadd.xlane.f32.xlu0 %v315
    %v317 = vpop.xlane.xlu0 %316
    %v318 = vmul.f32 %v317, %v311
    %v319 = vadd.f32 %v318, 1e-05
    %v320 = vrsqrt.pop %v319
    %v321 = vmul.f32 %v313, %v320
    %v322 = vld [vmem:[#allocation10 + $0x3] sm:$0x1]
    %v323 = vpack.c.bf16 %v322, %v322
    %v324 = vld [vmem:[#allocation10 + $0x4] sm:$0x1]
    %v325 = vpack.c.bf16 %v321, %v321
    %327 = vset.pattern.permute.xlu0 0
    %328 = vperm.xlu0 %327, %v324
    %v329 = vpop.permute.xlu0 %328
    %v332 = vsel %vm307, %v323, 0
    %v335 = vsel %vm307, %v325, 0
    %337 = vmatprep.subr.bf16.mxu0 0
    %338 = vmatpush1.bf16.xpose.msra.mxu0 0
    %339 = vmatprep.subr.bf16.mxu0 0
    %340 = vmatpush1.bf16.xpose.msra.mxu0 0
    %341 = vmatprep.subr.bf16.mxu0 0
    %342 = vmatpush1.bf16.xpose.msra.mxu0 0
    %343 = vmatprep.subr.bf16.mxu0 0
    %344 = vmatpush1.bf16.xpose.msra.mxu0 0
    %345 = vmatprep.subr.bf16.mxu0 0
    %346 = vmatpush1.bf16.xpose.msra.mxu0 0
    %347 = vmatprep.subr.bf16.mxu0 0
    %348 = vmatpush1.bf16.xpose.msra.mxu0 0
    %349 = vmatprep.subr.bf16.mxu0 0
    %350 = vmatpush1.bf16.xpose.msra.mxu0 0
    %351 = vmatprep.subr.bf16.mxu0 0
    %352 = vmatpush1.bf16.xpose.msra.mxu0 %v335
    %353 = vmatprep.subr.bf16.mxu0 0
    %354 = vmatpush2.bf16.xpose.msra.mxu0 0
    %355 = vmatprep.subr.bf16.mxu0 0
    %356 = vmatpush2.bf16.xpose.msra.mxu0 0
    %357 = vmatprep.subr.bf16.mxu0 0
    %358 = vmatpush2.bf16.xpose.msra.mxu0 0
    %359 = vmatprep.subr.bf16.mxu0 0
    %360 = vmatpush2.bf16.xpose.msra.mxu0 0
    %361 = vmatprep.subr.bf16.mxu0 0
    %362 = vmatpush2.bf16.xpose.msra.mxu0 0
    %363 = vmatprep.subr.bf16.mxu0 0
    %364 = vmatpush2.bf16.xpose.msra.mxu0 0
    %365 = vmatprep.subr.bf16.mxu0 0
    %366 = vmatpush2.bf16.xpose.msra.mxu0 0
    %367 = vmatprep.subr.bf16.mxu0 0
    %368 = vmatpush2.bf16.xpose.msra.mxu0 0
    %369 = vmatprep.mubr.bf16.mxu0 0
    %370 = vmatmul.mubr.bf16.gmra.mxu0 %v332
    %v371 = vpop.f32.mrf.mxu0
    %v372 = vadd.f32 %v329, %v371
    %v373 = vpop.f32.mrf.mxu0
    %v374 = vpop.f32.mrf.mxu0
    %v375 = vpop.f32.mrf.mxu0
    %376 = vdwg.mxu0
    %v377 = vxor.u32 %v372, 2147483648
    %v378 = vmul.f32 %v377, 1.442695
    %v379 = vpow.pop %v378
    %v380 = vadd.f32 %v379, 1.0
    %v381 = vrcp.pop %v380
    %v382 = vmul.f32 1.0, %v381
    %vm383 = vcmask 57344
    %384 = vst.msk [vmem:[#allocation11] sm:$0x1] %vm383, %v382
    // Predicated region
    $region42: #{tpu_custom_call.1} parent=1 // pred_check
      _
    $region43: #{tpu_custom_call.1} parent=1 // pred_check_branch
      %386 = sbr.rel (0) target = $region45
    $region44: #{tpu_custom_call.1} parent=1 // pred_region
      %s388 = ssub.s32 16, 16
      %389 = vsyncadd [#allocation4], %s388
      %s391 = sshll.u32 [#allocation11], 4
      %s392 = int_to_ptr.vmem [resolvable:$true] %s391
      %394 = dma.vmem_to_hbm [thread:$0]  %s392, 16, %s5, [#allocation4]
    $region45: #{tpu_custom_call.1} parent=1 // pred_fallthru
      _
    // Predicated region
    $region46: #{tpu_custom_call.1} parent=1 // pred_check
      _
    $region47: #{tpu_custom_call.1} parent=1 // pred_check_branch
      %396 = sbr.rel (0) target = $region49
    $region48: #{tpu_custom_call.1} parent=1 // pred_region
      %397 = dma.done [#allocation4], 16
    $region49: #{tpu_custom_call.1} parent=1 // pred_fallthru
      _
    %398 = vsyncpa [#allocation3], 1
    %399 = vsyncpa [#allocation6], 1
    %400 = vsyncpa [#allocation9], 1
    %401 = vsyncpa [#allocation4], 1

</llo_original>
